<compile_context>
chip_gen: v7x
topology: tpu7x:2x2x1
jax: 0.10.0
libtpu: 0.0.40
codegen_flags: <defaults>
</compile_context>

<pallas_src>
import functools

import numpy as np
import jax
import jax.numpy as jnp
from jax.experimental import pallas as pl
from jax.experimental.pallas import tpu as pltpu


def _spatial_softmax_kernel(temp_ref, feat_ref, p_ref, out_ref):
    # temp_ref: SMEM (1,)           temperature scalar
    # feat_ref: VMEM (TILE_R, HW)   one tile of flattened feature rows
    # p_ref:    VMEM (HW, 128)      resident reduction matrix,
    #                               cols [ones, pos_x, pos_y, 0...]
    # out_ref:  VMEM (TILE_R, 2)    columns = (expected_x, expected_y)
    inv_t = 1.0 / temp_ref[0]                       # one scalar reciprocal
    f = feat_ref[...].astype(jnp.float32) * inv_t   # multiply, not divide

    # numerically stable softmax numerator over the HW (lane) axis
    m = jnp.max(f, axis=-1, keepdims=True)
    e = jnp.exp(f - m)

    # One MXU matmul fuses the three reductions:
    #   red[:, 0] = sum(e)          (softmax denominator)
    #   red[:, 1] = sum(pos_x * e)  (unnormalized expected_x)
    #   red[:, 2] = sum(pos_y * e)  (unnormalized expected_y)
    red = jnp.dot(e, p_ref[...],
                  precision=jax.lax.Precision.HIGHEST,
                  preferred_element_type=jnp.float32)        # (TILE_R, 128)

    inv_d = pl.reciprocal(red[:, 0:1], approx=False)          # (TILE_R, 1)
    # lane-resident result columns -> one small store, no cross-lane concat
    out_ref[...] = (red[:, 1:3] * inv_d).astype(out_ref.dtype)


@functools.lru_cache(maxsize=None)
def _tpu_vmem_and_cores():
    """Per-TensorCore VMEM capacity and TC count (generation aware)."""
    vmem_cap = None
    cores = None
    try:
        info = pltpu.get_tpu_info()
        vmem_cap = int(getattr(info, "vmem_capacity_bytes", 0)) or None
        for attr in ("num_tensorcores", "tensorcores_per_chip",
                     "num_cores", "cores_per_chip"):
            v = getattr(info, attr, None)
            if v:
                cores = int(v)
                break
    except Exception:
        pass
    if vmem_cap is None:
        vmem_cap = 64 << 20            # conservative: fits every generation
    if cores is None:
        # v7x exposes 64 MiB VMEM per TC and has 2 TCs; v5e/v6e: 128 MiB, 1 TC
        cores = 2 if vmem_cap <= (64 << 20) else 1
    return vmem_cap, cores


def _choose_tile_r(R, HW, feat_itemsize, vmem_cap, num_cores):
    """Largest row tile allowed by the generation-aware VMEM budget."""
    # Feature double-buffer slab budget.  v5e/v6e have 128 MiB physical VMEM
    # (budget ~28 MiB); v7x has 64 MiB and the f32 temporaries (~3x the tile
    # slab) must also fit, so cap the slab at ~12 MiB there.
    slab_budget = (28 << 20) if vmem_cap >= (96 << 20) else (12 << 20)

    bytes_per_row = HW * feat_itemsize
    max_rows_by_vmem = max(8, slab_budget // (2 * bytes_per_row))
    tile = min(R, max_rows_by_vmem)

    # Megacore only: keep >= 2 grid steps per TensorCore so both cores'
    # pipelines stay primed.  On 1-TC chips the grid is a serial loop and
    # splitting is pure per-step overhead.
    gran = 8 if feat_itemsize >= 4 else 16      # sublane packing granularity
    if num_cores > 1:
        min_steps = 2 * num_cores
        if R >= min_steps * gran:
            tile = min(tile, -(-R // min_steps))

    tile = max(gran, (tile // gran) * gran)
    return tile


@functools.partial(jax.jit, static_argnames=("height", "width", "channel"))
def spatial_softmax(feature, temperature, pos_x, pos_y, *, height, width, channel):
    """feature: (N, C, H, W) (NCHW, same as the PyTorch module)."""
    HW = height * width
    R = feature.shape[0] * channel

    feat2d = feature.reshape(R, HW)         # == feature.view(-1, H*W); dtype preserved
    feat_itemsize = jnp.dtype(feat2d.dtype).itemsize

    # Resident reduction matrix: columns [ones, pos_x, pos_y, 0 ... 0].
    cols = jnp.stack([jnp.ones((HW,), jnp.float32),
                      pos_x.reshape(HW).astype(jnp.float32),
                      pos_y.reshape(HW).astype(jnp.float32)], axis=1)   # (HW, 3)
    pmat = jnp.pad(cols, ((0, 0), (0, 128 - 3)))                        # (HW, 128)

    vmem_cap, num_cores = _tpu_vmem_and_cores()
    tile_r = _choose_tile_r(R, HW, feat_itemsize, vmem_cap, num_cores)
    num_steps = pl.cdiv(R, tile_r)
    grid = (num_steps,)                     # no jnp.pad: partial last block

    # Triple-buffer the feature stream only when huge HW forces tiny row tiles
    # (keeps the HBM stream continuous despite per-step DMA issue latency).
    use_triple = (tile_r <= 32) and (num_steps >= 8)
    feat_bufs = 3 if use_triple else 2
    if use_triple:
        feat_spec = pl.BlockSpec((tile_r, HW), lambda i: (i, 0),
                                 pipeline_mode=pl.Buffered(3))
    else:
        feat_spec = pl.BlockSpec((tile_r, HW), lambda i: (i, 0))

    # VMEM estimate: feature buffers + in-kernel f32 temporaries (f, e + slack)
    # + resident P + lane-padded output buffers + headroom.
    est = (feat_bufs * tile_r * HW * feat_itemsize     # feature multi-buffer
           + 3 * tile_r * HW * 4                       # f, e, intermediates (f32)
           + 2 * HW * 128 * 4                          # P (HW,128) buffers
           + 2 * tile_r * 128 * 4                      # (tile,2) output, lane-padded
           + (8 << 20))                                # headroom
    hard_cap = min(vmem_cap - (8 << 20), 96 << 20)
    vmem_limit = int(min(max(est, 48 << 20), hard_cap))

    out = pl.pallas_call(
        _spatial_softmax_kernel,
        out_shape=jax.ShapeDtypeStruct((R, 2), jnp.float32),
        grid_spec=pltpu.PrefetchScalarGridSpec(
            num_scalar_prefetch=0,
            grid=grid,
            in_specs=[
                pl.BlockSpec(memory_space=pltpu.MemorySpace.SMEM),   # temperature
                feat_spec,                                           # feature rows
                pl.BlockSpec((HW, 128), lambda i: (0, 0)),           # reduction matrix
            ],
            out_specs=pl.BlockSpec((tile_r, 2), lambda i: (i, 0)),
        ),
        compiler_params=pltpu.CompilerParams(
            dimension_semantics=("parallel",),
            vmem_limit_bytes=vmem_limit),
    )(temperature, feat2d, pmat)

    # out[:, 0] == expected_x, out[:, 1] == expected_y  (== torch.cat([ex, ey], 1))
    return out.reshape(-1, channel * 2)                 # (N, 2*C)


def make_spatial_softmax_params(height, width, temperature=None):
    """Replicates SpatialSoftmax.__init__ buffers/parameters deterministically."""
    temp_val = 1.0 if temperature is None else float(temperature)
    temp = jnp.ones((1,), dtype=jnp.float32) * temp_val
    # np.meshgrid default 'xy' indexing, exactly as in the PyTorch module.
    # NOTE: for non-square H != W the torch module builds a (W, H) grid and
    # flat-reshapes it to H*W; this quirk is replicated verbatim here.
    pos_x_np, pos_y_np = np.meshgrid(np.linspace(-1.0, 1.0, height),
                                     np.linspace(-1.0, 1.0, width))
    pos_x = jnp.asarray(pos_x_np.reshape(height * width), dtype=jnp.float32)
    pos_y = jnp.asarray(pos_y_np.reshape(height * width), dtype=jnp.float32)
    return temp, pos_x, pos_y


def _reference(feature, temp, pos_x, pos_y, height, width, channel):
    """Pure-JAX reference matching the PyTorch forward, for sanity checking."""
    f = feature.astype(jnp.float32).reshape(-1, height * width) / temp
    attn = jax.nn.softmax(f, axis=-1)
    ex = jnp.sum(pos_x[None, :] * attn, axis=1, keepdims=True)
    ey = jnp.sum(pos_y[None, :] * attn, axis=1, keepdims=True)
    return jnp.concatenate([ex, ey], axis=1).reshape(-1, channel * 2)


if __name__ == "__main__":
    N, C, H, W = 2, 4, 16, 16
    key = jax.random.PRNGKey(0)
    feature = jax.random.normal(key, (N, C, H, W), dtype=jnp.float32)

    temp, pos_x, pos_y = make_spatial_softmax_params(H, W, temperature=None)

    out = spatial_softmax(feature, temp, pos_x, pos_y,
                          height=H, width=W, channel=C)
    out = jax.block_until_ready(out)

    ref = _reference(feature, temp, pos_x, pos_y, H, W, C)
    assert out.shape == (N, 2 * C), out.shape
    np.testing.assert_allclose(np.asarray(out), np.asarray(ref),
                               rtol=1e-5, atol=1e-5)
    print("KERNEL_OK")
</pallas_src>

<mosaic_0001>
module attributes {stable_mosaic.version = 11 : i64} {
  func.func @_spatial_softmax_kernel(%arg0: i32, %arg1: memref<1xf32, #tpu.memory_space<smem>>, %arg2: memref<8x256xf32, #tpu.memory_space<vmem>>, %arg3: memref<256x128xf32, #tpu.memory_space<vmem>>, %arg4: memref<8x2xf32, #tpu.memory_space<vmem>>) attributes {dimension_semantics = [#tpu.dimension_semantics<parallel>], iteration_bounds = array<i64: 1>, scalar_prefetch = 0 : i64, scratch_operands = 0 : i64, tpu.core_type = #tpu.core_type<tc>, window_params = [{transform_indices = @transform_0, window_bounds = array<i64: 1>}, {transform_indices = @transform_1, window_bounds = array<i64: 8, 256>}, {pipeline_mode = #tpu.pipeline_mode<synchronous>, transform_indices = @transform_2, window_bounds = array<i64: 256, 128>}, {transform_indices = @transform_3, window_bounds = array<i64: 8, 2>}]} {
    %c0 = arith.constant 0 : index
    %0 = memref.load %arg1[%c0] : memref<1xf32, #tpu.memory_space<smem>>
    %cst = arith.constant 1.000000e+00 : f32
    %1 = arith.divf %cst, %0 : f32
    %c0_0 = arith.constant 0 : index
    %c0_1 = arith.constant 0 : index
    %2 = vector.load %arg2[%c0_0, %c0_1] : memref<8x256xf32, #tpu.memory_space<vmem>>, vector<8x256xf32>
    %3 = vector.broadcast %1 : f32 to vector<8x256xf32>
    %4 = arith.mulf %2, %3 : vector<8x256xf32>
    %cst_2 = arith.constant dense<0xFF800000> : vector<8xf32>
    %5 = vector.multi_reduction <maximumf>, %4, %cst_2 [1] : vector<8x256xf32> to vector<8xf32>
    %6 = vector.shape_cast %5 : vector<8xf32> to vector<8x1xf32>
    %7 = vector.broadcast %6 : vector<8x1xf32> to vector<8x256xf32>
    %8 = arith.subf %4, %7 : vector<8x256xf32>
    %9 = math.exp %8 : vector<8x256xf32>
    %c0_3 = arith.constant 0 : index
    %c0_4 = arith.constant 0 : index
    %10 = vector.load %arg3[%c0_3, %c0_4] : memref<256x128xf32, #tpu.memory_space<vmem>>, vector<256x128xf32>
    %cst_5 = arith.constant dense<0.000000e+00> : vector<8x128xf32>
    %11 = tpu.matmul %9, %10, %cst_5 {dimension_numbers = #tpu.dot_dimension_numbers<[1], [0], [0], [1], [0, 0, 1, 1], [], []>, precision = #tpu.contract_precision<fp32>} : vector<8x256xf32>, vector<256x128xf32>, vector<8x128xf32> -> vector<8x128xf32>
    %12 = vector.extract_strided_slice %11 {offsets = [0, 0], sizes = [8, 1], strides = [1, 1]} : vector<8x128xf32> to vector<8x1xf32>
    %13 = tpu.reciprocal %12 : vector<8x1xf32> -> vector<8x1xf32>
    %14 = vector.extract_strided_slice %11 {offsets = [0, 1], sizes = [8, 2], strides = [1, 1]} : vector<8x128xf32> to vector<8x2xf32>
    %15 = vector.broadcast %13 : vector<8x1xf32> to vector<8x2xf32>
    %16 = arith.mulf %14, %15 : vector<8x2xf32>
    %c0_6 = arith.constant 0 : index
    %c0_7 = arith.constant 0 : index
    %17 = vector.load %arg4[%c0_6, %c0_7] : memref<8x2xf32, #tpu.memory_space<vmem>>, vector<8x2xf32>
    tpu.vector_store %arg4[%c0_6, %c0_7], %16 {strides = array<i32>} : memref<8x2xf32, #tpu.memory_space<vmem>>, vector<8x2xf32>,
    return
  }
  func.func @transform_0(%arg0: i32) -> i32 {
    %c0_i32 = arith.constant 0 : i32
    %c0_i32_0 = arith.constant 0 : i32
    return %c0_i32 : i32
  }
  func.func @transform_1(%arg0: i32) -> (i32, i32) {
    %c0_i32 = arith.constant 0 : i32
    %c0_i32_0 = arith.constant 0 : i32
    return %arg0, %c0_i32 : i32, i32
  }
  func.func @transform_2(%arg0: i32) -> (i32, i32) {
    %c0_i32 = arith.constant 0 : i32
    %c0_i32_0 = arith.constant 0 : i32
    %c0_i32_1 = arith.constant 0 : i32
    return %c0_i32, %c0_i32_0 : i32, i32
  }
  func.func @transform_3(%arg0: i32) -> (i32, i32) {
    %c0_i32 = arith.constant 0 : i32
    %c0_i32_0 = arith.constant 0 : i32
    return %arg0, %c0_i32 : i32, i32
  }
}

</mosaic_0001>

<llo_original>
// kernel: spatial_softmax.1
$region0: #{spatial_softmax.1}
  #allocation0 [shape = 'u32[]', space=smem, size = 0x4, offset = 0x4, fixed_abs, tag = 'smem constant byte address 0x4 - core index']
  #allocation1 [shape = 'u32[144,128]{1,0:T(1,128)}', space=vmem, size = 0x12000, scoped, tag = 'internal scratch']
  #allocation2 [shape = 'f32[1]{0:T(128)S(6)}', space=smem, size = 0x200, scoped, tag = 'scoped memory for spatial_softmax.1']
  %s0 = inlined_call_operand.<no memory space> [shape: f32[1], index: 0, kind: input, shape index: {}]
  %s1 = inlined_call_operand.vmem [shape: f32[8,256], index: 1, kind: input, shape index: {}]
  %s2 = inlined_call_operand.vmem [shape: f32[256,128], index: 2, kind: input, shape index: {}]
  %s3 = inlined_call_operand.vmem [shape: f32[8,2], index: 3, kind: output, shape index: {}]
  %s4 = sld [smem:[#allocation0]]
  $region22: #{spatial_softmax.1} parent=0
    _
  %s6 = ssub.s32 1, %s4
  %s7 = scalar_select 0, %s6, %s4
  %8 = sst [smem:[#allocation2]] %s0
  // Predicated region
  $region2: #{spatial_softmax.1} parent=0 // pred_check
    _
  $region3: #{spatial_softmax.1} parent=0 // pred_check_branch
    %10 = sbr.rel (0) target = $region5
  $region4: #{spatial_softmax.1} parent=0 // pred_region
    _
  $region5: #{spatial_softmax.1} parent=0 // pred_fallthru
    _
  // Predicated region
  $region6: #{spatial_softmax.1} parent=0 // pred_check
    _
  $region7: #{spatial_softmax.1} parent=0 // pred_check_branch
    %12 = sbr.rel (0) target = $region9
  $region8: #{spatial_softmax.1} parent=0 // pred_region
    _
  $region9: #{spatial_softmax.1} parent=0 // pred_fallthru
    _
  // Predicated region
  $region10: #{spatial_softmax.1} parent=0 // pred_check
    _
  $region11: #{spatial_softmax.1} parent=0 // pred_check_branch
    %14 = sbr.rel (0) target = $region13
  $region12: #{spatial_softmax.1} parent=0 // pred_region
    _
  $region13: #{spatial_softmax.1} parent=0 // pred_fallthru
    _
  %s15 = sld [smem:[#allocation2]]
  %v16 = vstv %s15
  %v17 = vrcp.pop %v16
  %s18 = vtos %v17
  %v19 = vld [vmem:[%s1] sm:$0xff]
  %v20 = vld [vmem:[%s1 + $0x8] sm:$0xff]
  %v21 = vstv %s18
  %v22 = vmul.f32 %v19, %v21
  %v23 = vmul.f32 %v20, %v21
  %v24 = vmax.f32 %v22, %v23
  %25 = vmax.xlane.f32.xlu0 %v24
  %v26 = vpop.xlane.xlu0 %25
  %v27 = vsub.f32 %v22, %v26
  %v28 = vsub.f32 %v23, %v26
  %v29 = vmul.f32 %v27, 1.442695
  %v30 = vpow.pop %v29
  %v31 = vmul.f32 %v28, 1.442695
  %v32 = vpow.pop %v31
  %v33 = vld [vmem:[%s2] sm:$0xff]
  %v34 = vld [vmem:[%s2 + $0x8] sm:$0xff]
  %v35 = vld [vmem:[%s2 + $0x10] sm:$0xff]
  %v36 = vld [vmem:[%s2 + $0x18] sm:$0xff]
  %v37 = vld [vmem:[%s2 + $0x20] sm:$0xff]
  %v38 = vld [vmem:[%s2 + $0x28] sm:$0xff]
  %v39 = vld [vmem:[%s2 + $0x30] sm:$0xff]
  %v40 = vld [vmem:[%s2 + $0x38] sm:$0xff]
  %v41 = vld [vmem:[%s2 + $0x40] sm:$0xff]
  %v42 = vld [vmem:[%s2 + $0x48] sm:$0xff]
  %v43 = vld [vmem:[%s2 + $0x50] sm:$0xff]
  %v44 = vld [vmem:[%s2 + $0x58] sm:$0xff]
  %v45 = vld [vmem:[%s2 + $0x60] sm:$0xff]
  %v46 = vld [vmem:[%s2 + $0x68] sm:$0xff]
  %v47 = vld [vmem:[%s2 + $0x70] sm:$0xff]
  %v48 = vld [vmem:[%s2 + $0x78] sm:$0xff]
  %v49 = vld [vmem:[%s2 + $0x80] sm:$0xff]
  %v50 = vld [vmem:[%s2 + $0x88] sm:$0xff]
  %v51 = vld [vmem:[%s2 + $0x90] sm:$0xff]
  %v52 = vld [vmem:[%s2 + $0x98] sm:$0xff]
  %v53 = vld [vmem:[%s2 + $0xa0] sm:$0xff]
  %v54 = vld [vmem:[%s2 + $0xa8] sm:$0xff]
  %v55 = vld [vmem:[%s2 + $0xb0] sm:$0xff]
  %v56 = vld [vmem:[%s2 + $0xb8] sm:$0xff]
  %v57 = vld [vmem:[%s2 + $0xc0] sm:$0xff]
  %v58 = vld [vmem:[%s2 + $0xc8] sm:$0xff]
  %v59 = vld [vmem:[%s2 + $0xd0] sm:$0xff]
  %v60 = vld [vmem:[%s2 + $0xd8] sm:$0xff]
  %v61 = vld [vmem:[%s2 + $0xe0] sm:$0xff]
  %v62 = vld [vmem:[%s2 + $0xe8] sm:$0xff]
  %v63 = vld [vmem:[%s2 + $0xf0] sm:$0xff]
  %v64 = vld [vmem:[%s2 + $0xf8] sm:$0xff]
  %65 = vmatprep.subr.mxu0 0.0
  %v66 = vand.u32 %v33, 4294901760
  %67 = vmatpush1.msra.mxu0 %v66
  %68 = vmatprep.subr.mxu0 0.0
  %v69 = vand.u32 %v34, 4294901760
  %70 = vmatpush1.msra.mxu0 %v69
  %71 = vmatprep.subr.mxu0 0.0
  %v72 = vand.u32 %v35, 4294901760
  %73 = vmatpush1.msra.mxu0 %v72
  %74 = vmatprep.subr.mxu0 0.0
  %v75 = vand.u32 %v36, 4294901760
  %76 = vmatpush1.msra.mxu0 %v75
  %77 = vmatprep.subr.mxu0 0.0
  %v78 = vand.u32 %v37, 4294901760
  %79 = vmatpush1.msra.mxu0 %v78
  %80 = vmatprep.subr.mxu0 0.0
  %v81 = vand.u32 %v38, 4294901760
  %82 = vmatpush1.msra.mxu0 %v81
  %83 = vmatprep.subr.mxu0 0.0
  %v84 = vand.u32 %v39, 4294901760
  %85 = vmatpush1.msra.mxu0 %v84
  %86 = vmatprep.subr.mxu0 0.0
  %v87 = vand.u32 %v40, 4294901760
  %88 = vmatpush1.msra.mxu0 %v87
  %89 = vmatprep.subr.mxu0 0.0
  %v90 = vand.u32 %v41, 4294901760
  %91 = vmatpush1.msra.mxu0 %v90
  %92 = vmatprep.subr.mxu0 0.0
  %v93 = vand.u32 %v42, 4294901760
  %94 = vmatpush1.msra.mxu0 %v93
  %95 = vmatprep.subr.mxu0 0.0
  %v96 = vand.u32 %v43, 4294901760
  %97 = vmatpush1.msra.mxu0 %v96
  %98 = vmatprep.subr.mxu0 0.0
  %v99 = vand.u32 %v44, 4294901760
  %100 = vmatpush1.msra.mxu0 %v99
  %101 = vmatprep.subr.mxu0 0.0
  %v102 = vand.u32 %v45, 4294901760
  %103 = vmatpush1.msra.mxu0 %v102
  %104 = vmatprep.subr.mxu0 0.0
  %v105 = vand.u32 %v46, 4294901760
  %106 = vmatpush1.msra.mxu0 %v105
  %107 = vmatprep.subr.mxu0 0.0
  %v108 = vand.u32 %v47, 4294901760
  %109 = vmatpush1.msra.mxu0 %v108
  %110 = vmatprep.subr.mxu0 0.0
  %v111 = vand.u32 %v48, 4294901760
  %112 = vmatpush1.msra.mxu0 %v111
  %113 = vmatprep.subr.mxu0 0.0
  %v114 = vand.u32 %v49, 4294901760
  %115 = vmatpush1.msra.mxu0 %v114
  %116 = vmatprep.subr.mxu0 0.0
  %v117 = vand.u32 %v50, 4294901760
  %118 = vmatpush1.msra.mxu0 %v117
  %119 = vmatprep.subr.mxu0 0.0
  %v120 = vand.u32 %v51, 4294901760
  %121 = vmatpush1.msra.mxu0 %v120
  %122 = vmatprep.subr.mxu0 0.0
  %v123 = vand.u32 %v52, 4294901760
  %124 = vmatpush1.msra.mxu0 %v123
  %125 = vmatprep.subr.mxu0 0.0
  %v126 = vand.u32 %v53, 4294901760
  %127 = vmatpush1.msra.mxu0 %v126
  %128 = vmatprep.subr.mxu0 0.0
  %v129 = vand.u32 %v54, 4294901760
  %130 = vmatpush1.msra.mxu0 %v129
  %131 = vmatprep.subr.mxu0 0.0
  %v132 = vand.u32 %v55, 4294901760
  %133 = vmatpush1.msra.mxu0 %v132
  %134 = vmatprep.subr.mxu0 0.0
  %v135 = vand.u32 %v56, 4294901760
  %136 = vmatpush1.msra.mxu0 %v135
  %137 = vmatprep.subr.mxu0 0.0
  %v138 = vand.u32 %v57, 4294901760
  %139 = vmatpush1.msra.mxu0 %v138
  %140 = vmatprep.subr.mxu0 0.0
  %v141 = vand.u32 %v58, 4294901760
  %142 = vmatpush1.msra.mxu0 %v141
  %143 = vmatprep.subr.mxu0 0.0
  %v144 = vand.u32 %v59, 4294901760
  %145 = vmatpush1.msra.mxu0 %v144
  %146 = vmatprep.subr.mxu0 0.0
  %v147 = vand.u32 %v60, 4294901760
  %148 = vmatpush1.msra.mxu0 %v147
  %149 = vmatprep.subr.mxu0 0.0
  %v150 = vand.u32 %v61, 4294901760
  %151 = vmatpush1.msra.mxu0 %v150
  %152 = vmatprep.subr.mxu0 0.0
  %v153 = vand.u32 %v62, 4294901760
  %154 = vmatpush1.msra.mxu0 %v153
  %155 = vmatprep.subr.mxu0 0.0
  %v156 = vand.u32 %v63, 4294901760
  %157 = vmatpush1.msra.mxu0 %v156
  %158 = vmatprep.subr.mxu0 0.0
  %v159 = vand.u32 %v64, 4294901760
  %160 = vmatpush1.msra.mxu0 %v159
  %v161 = vand.u32 %v32, 4294901760
  %v162 = vsub.f32 %v32, %v161
  %v163 = vand.u32 %v162, 4294901760
  %v164 = vsub.f32 %v162, %v163
  %v165 = vand.u32 %v164, 4294901760
  %166 = vmatprep.mubr.f32.mxu0 %v165
  %v167 = vand.u32 %v30, 4294901760
  %v168 = vsub.f32 %v30, %v167
  %v169 = vand.u32 %v168, 4294901760
  %v170 = vsub.f32 %v168, %v169
  %v171 = vand.u32 %v170, 4294901760
  %172 = vmatmul.mubr.f32.gmra.mrb[0].mxu0 %v171
  %v173 = vpop.f32.mrb[0].mxu0
  %v174 = vadd.f32 0.0, %v173
  %v175 = vpop.f32.mrb[0].mxu0
  %176 = vdwg.mxu0
  %177 = vmatprep.subr.mxu0 0.0
  %v178 = vand.u32 %v33, 4294901760
  %v179 = vsub.f32 %v33, %v178
  %v180 = vand.u32 %v179, 4294901760
  %v181 = vsub.f32 %v179, %v180
  %v182 = vand.u32 %v181, 4294901760
  %183 = vmatpush1.msra.mxu0 %v182
  %184 = vmatprep.subr.mxu0 0.0
  %v185 = vand.u32 %v34, 4294901760
  %v186 = vsub.f32 %v34, %v185
  %v187 = vand.u32 %v186, 4294901760
  %v188 = vsub.f32 %v186, %v187
  %v189 = vand.u32 %v188, 4294901760
  %190 = vmatpush1.msra.mxu0 %v189
  %191 = vmatprep.subr.mxu0 0.0
  %v192 = vand.u32 %v35, 4294901760
  %v193 = vsub.f32 %v35, %v192
  %v194 = vand.u32 %v193, 4294901760
  %v195 = vsub.f32 %v193, %v194
  %v196 = vand.u32 %v195, 4294901760
  %197 = vmatpush1.msra.mxu0 %v196
  %198 = vmatprep.subr.mxu0 0.0
  %v199 = vand.u32 %v36, 4294901760
  %v200 = vsub.f32 %v36, %v199
  %v201 = vand.u32 %v200, 4294901760
  %v202 = vsub.f32 %v200, %v201
  %v203 = vand.u32 %v202, 4294901760
  %204 = vmatpush1.msra.mxu0 %v203
  %205 = vmatprep.subr.mxu0 0.0
  %v206 = vand.u32 %v37, 4294901760
  %v207 = vsub.f32 %v37, %v206
  %v208 = vand.u32 %v207, 4294901760
  %v209 = vsub.f32 %v207, %v208
  %v210 = vand.u32 %v209, 4294901760
  %211 = vmatpush1.msra.mxu0 %v210
  %212 = vmatprep.subr.mxu0 0.0
  %v213 = vand.u32 %v38, 4294901760
  %v214 = vsub.f32 %v38, %v213
  %v215 = vand.u32 %v214, 4294901760
  %v216 = vsub.f32 %v214, %v215
  %v217 = vand.u32 %v216, 4294901760
  %218 = vmatpush1.msra.mxu0 %v217
  %219 = vmatprep.subr.mxu0 0.0
  %v220 = vand.u32 %v39, 4294901760
  %v221 = vsub.f32 %v39, %v220
  %v222 = vand.u32 %v221, 4294901760
  %v223 = vsub.f32 %v221, %v222
  %v224 = vand.u32 %v223, 4294901760
  %225 = vmatpush1.msra.mxu0 %v224
  %226 = vmatprep.subr.mxu0 0.0
  %v227 = vand.u32 %v40, 4294901760
  %v228 = vsub.f32 %v40, %v227
  %v229 = vand.u32 %v228, 4294901760
  %v230 = vsub.f32 %v228, %v229
  %v231 = vand.u32 %v230, 4294901760
  %232 = vmatpush1.msra.mxu0 %v231
  %233 = vmatprep.subr.mxu0 0.0
  %v234 = vand.u32 %v41, 4294901760
  %v235 = vsub.f32 %v41, %v234
  %v236 = vand.u32 %v235, 4294901760
  %v237 = vsub.f32 %v235, %v236
  %v238 = vand.u32 %v237, 4294901760
  %239 = vmatpush1.msra.mxu0 %v238
  %240 = vmatprep.subr.mxu0 0.0
  %v241 = vand.u32 %v42, 4294901760
  %v242 = vsub.f32 %v42, %v241
  %v243 = vand.u32 %v242, 4294901760
  %v244 = vsub.f32 %v242, %v243
  %v245 = vand.u32 %v244, 4294901760
  %246 = vmatpush1.msra.mxu0 %v245
  %247 = vmatprep.subr.mxu0 0.0
  %v248 = vand.u32 %v43, 4294901760
  %v249 = vsub.f32 %v43, %v248
  %v250 = vand.u32 %v249, 4294901760
  %v251 = vsub.f32 %v249, %v250
  %v252 = vand.u32 %v251, 4294901760
  %253 = vmatpush1.msra.mxu0 %v252
  %254 = vmatprep.subr.mxu0 0.0
  %v255 = vand.u32 %v44, 4294901760
  %v256 = vsub.f32 %v44, %v255
  %v257 = vand.u32 %v256, 4294901760
  %v258 = vsub.f32 %v256, %v257
  %v259 = vand.u32 %v258, 4294901760
  %260 = vmatpush1.msra.mxu0 %v259
  %261 = vmatprep.subr.mxu0 0.0
  %v262 = vand.u32 %v45, 4294901760
  %v263 = vsub.f32 %v45, %v262
  %v264 = vand.u32 %v263, 4294901760
  %v265 = vsub.f32 %v263, %v264
  %v266 = vand.u32 %v265, 4294901760
  %267 = vmatpush1.msra.mxu0 %v266
  %268 = vmatprep.subr.mxu0 0.0
  %v269 = vand.u32 %v46, 4294901760
  %v270 = vsub.f32 %v46, %v269
  %v271 = vand.u32 %v270, 4294901760
  %v272 = vsub.f32 %v270, %v271
  %v273 = vand.u32 %v272, 4294901760
  %274 = vmatpush1.msra.mxu0 %v273
  %275 = vmatprep.subr.mxu0 0.0
  %v276 = vand.u32 %v47, 4294901760
  %v277 = vsub.f32 %v47, %v276
  %v278 = vand.u32 %v277, 4294901760
  %v279 = vsub.f32 %v277, %v278
  %v280 = vand.u32 %v279, 4294901760
  %281 = vmatpush1.msra.mxu0 %v280
  %282 = vmatprep.subr.mxu0 0.0
  %v283 = vand.u32 %v48, 4294901760
  %v284 = vsub.f32 %v48, %v283
  %v285 = vand.u32 %v284, 4294901760
  %v286 = vsub.f32 %v284, %v285
  %v287 = vand.u32 %v286, 4294901760
  %288 = vmatpush1.msra.mxu0 %v287
  %289 = vmatprep.subr.mxu0 0.0
  %v290 = vand.u32 %v49, 4294901760
  %v291 = vsub.f32 %v49, %v290
  %v292 = vand.u32 %v291, 4294901760
  %v293 = vsub.f32 %v291, %v292
  %v294 = vand.u32 %v293, 4294901760
  %295 = vmatpush1.msra.mxu0 %v294
  %296 = vmatprep.subr.mxu0 0.0
  %v297 = vand.u32 %v50, 4294901760
  %v298 = vsub.f32 %v50, %v297
  %v299 = vand.u32 %v298, 4294901760
  %v300 = vsub.f32 %v298, %v299
  %v301 = vand.u32 %v300, 4294901760
  %302 = vmatpush1.msra.mxu0 %v301
  %303 = vmatprep.subr.mxu0 0.0
  %v304 = vand.u32 %v51, 4294901760
  %v305 = vsub.f32 %v51, %v304
  %v306 = vand.u32 %v305, 4294901760
  %v307 = vsub.f32 %v305, %v306
  %v308 = vand.u32 %v307, 4294901760
  %309 = vmatpush1.msra.mxu0 %v308
  %310 = vmatprep.subr.mxu0 0.0
  %v311 = vand.u32 %v52, 4294901760
  %v312 = vsub.f32 %v52, %v311
  %v313 = vand.u32 %v312, 4294901760
  %v314 = vsub.f32 %v312, %v313
  %v315 = vand.u32 %v314, 4294901760
  %316 = vmatpush1.msra.mxu0 %v315
  %317 = vmatprep.subr.mxu0 0.0
  %v318 = vand.u32 %v53, 4294901760
  %v319 = vsub.f32 %v53, %v318
  %v320 = vand.u32 %v319, 4294901760
  %v321 = vsub.f32 %v319, %v320
  %v322 = vand.u32 %v321, 4294901760
  %323 = vmatpush1.msra.mxu0 %v322
  %324 = vmatprep.subr.mxu0 0.0
  %v325 = vand.u32 %v54, 4294901760
  %v326 = vsub.f32 %v54, %v325
  %v327 = vand.u32 %v326, 4294901760
  %v328 = vsub.f32 %v326, %v327
  %v329 = vand.u32 %v328, 4294901760
  %330 = vmatpush1.msra.mxu0 %v329
  %331 = vmatprep.subr.mxu0 0.0
  %v332 = vand.u32 %v55, 4294901760
  %v333 = vsub.f32 %v55, %v332
  %v334 = vand.u32 %v333, 4294901760
  %v335 = vsub.f32 %v333, %v334
  %v336 = vand.u32 %v335, 4294901760
  %337 = vmatpush1.msra.mxu0 %v336
  %338 = vmatprep.subr.mxu0 0.0
  %v339 = vand.u32 %v56, 4294901760
  %v340 = vsub.f32 %v56, %v339
  %v341 = vand.u32 %v340, 4294901760
  %v342 = vsub.f32 %v340, %v341
  %v343 = vand.u32 %v342, 4294901760
  %344 = vmatpush1.msra.mxu0 %v343
  %345 = vmatprep.subr.mxu0 0.0
  %v346 = vand.u32 %v57, 4294901760
  %v347 = vsub.f32 %v57, %v346
  %v348 = vand.u32 %v347, 4294901760
  %v349 = vsub.f32 %v347, %v348
  %v350 = vand.u32 %v349, 4294901760
  %351 = vmatpush1.msra.mxu0 %v350
  %352 = vmatprep.subr.mxu0 0.0
  %v353 = vand.u32 %v58, 4294901760
  %v354 = vsub.f32 %v58, %v353
  %v355 = vand.u32 %v354, 4294901760
  %v356 = vsub.f32 %v354, %v355
  %v357 = vand.u32 %v356, 4294901760
  %358 = vmatpush1.msra.mxu0 %v357
  %359 = vmatprep.subr.mxu0 0.0
  %v360 = vand.u32 %v59, 4294901760
  %v361 = vsub.f32 %v59, %v360
  %v362 = vand.u32 %v361, 4294901760
  %v363 = vsub.f32 %v361, %v362
  %v364 = vand.u32 %v363, 4294901760
  %365 = vmatpush1.msra.mxu0 %v364
  %366 = vmatprep.subr.mxu0 0.0
  %v367 = vand.u32 %v60, 4294901760
  %v368 = vsub.f32 %v60, %v367
  %v369 = vand.u32 %v368, 4294901760
  %v370 = vsub.f32 %v368, %v369
  %v371 = vand.u32 %v370, 4294901760
  %372 = vmatpush1.msra.mxu0 %v371
  %373 = vmatprep.subr.mxu0 0.0
  %v374 = vand.u32 %v61, 4294901760
  %v375 = vsub.f32 %v61, %v374
  %v376 = vand.u32 %v375, 4294901760
  %v377 = vsub.f32 %v375, %v376
  %v378 = vand.u32 %v377, 4294901760
  %379 = vmatpush1.msra.mxu0 %v378
  %380 = vmatprep.subr.mxu0 0.0
  %v381 = vand.u32 %v62, 4294901760
  %v382 = vsub.f32 %v62, %v381
  %v383 = vand.u32 %v382, 4294901760
  %v384 = vsub.f32 %v382, %v383
  %v385 = vand.u32 %v384, 4294901760
  %386 = vmatpush1.msra.mxu0 %v385
  %387 = vmatprep.subr.mxu0 0.0
  %v388 = vand.u32 %v63, 4294901760
  %v389 = vsub.f32 %v63, %v388
  %v390 = vand.u32 %v389, 4294901760
  %v391 = vsub.f32 %v389, %v390
  %v392 = vand.u32 %v391, 4294901760
  %393 = vmatpush1.msra.mxu0 %v392
  %394 = vmatprep.subr.mxu0 0.0
  %v395 = vand.u32 %v64, 4294901760
  %v396 = vsub.f32 %v64, %v395
  %v397 = vand.u32 %v396, 4294901760
  %v398 = vsub.f32 %v396, %v397
  %v399 = vand.u32 %v398, 4294901760
  %400 = vmatpush1.msra.mxu0 %v399
  %v401 = vand.u32 %v32, 4294901760
  %402 = vmatprep.mubr.f32.mxu0 %v401
  %v403 = vand.u32 %v30, 4294901760
  %404 = vmatmul.mubr.f32.gmra.mrb[0].mxu0 %v403
  %v405 = vpop.f32.mrb[0].mxu0
  %v406 = vadd.f32 %v174, %v405
  %v407 = vpop.f32.mrb[0].mxu0
  %408 = vdwg.mxu0
  %409 = vmatprep.subr.mxu0 0.0
  %v410 = vand.u32 %v33, 4294901760
  %v411 = vsub.f32 %v33, %v410
  %412 = vmatpush1.msra.mxu0 %v411
  %413 = vmatprep.subr.mxu0 0.0
  %v414 = vand.u32 %v34, 4294901760
  %v415 = vsub.f32 %v34, %v414
  %416 = vmatpush1.msra.mxu0 %v415
  %417 = vmatprep.subr.mxu0 0.0
  %v418 = vand.u32 %v35, 4294901760
  %v419 = vsub.f32 %v35, %v418
  %420 = vmatpush1.msra.mxu0 %v419
  %421 = vmatprep.subr.mxu0 0.0
  %v422 = vand.u32 %v36, 4294901760
  %v423 = vsub.f32 %v36, %v422
  %424 = vmatpush1.msra.mxu0 %v423
  %425 = vmatprep.subr.mxu0 0.0
  %v426 = vand.u32 %v37, 4294901760
  %v427 = vsub.f32 %v37, %v426
  %428 = vmatpush1.msra.mxu0 %v427
  %429 = vmatprep.subr.mxu0 0.0
  %v430 = vand.u32 %v38, 4294901760
  %v431 = vsub.f32 %v38, %v430
  %432 = vmatpush1.msra.mxu0 %v431
  %433 = vmatprep.subr.mxu0 0.0
  %v434 = vand.u32 %v39, 4294901760
  %v435 = vsub.f32 %v39, %v434
  %436 = vmatpush1.msra.mxu0 %v435
  %437 = vmatprep.subr.mxu0 0.0
  %v438 = vand.u32 %v40, 4294901760
  %v439 = vsub.f32 %v40, %v438
  %440 = vmatpush1.msra.mxu0 %v439
  %441 = vmatprep.subr.mxu0 0.0
  %v442 = vand.u32 %v41, 4294901760
  %v443 = vsub.f32 %v41, %v442
  %444 = vmatpush1.msra.mxu0 %v443
  %445 = vmatprep.subr.mxu0 0.0
  %v446 = vand.u32 %v42, 4294901760
  %v447 = vsub.f32 %v42, %v446
  %448 = vmatpush1.msra.mxu0 %v447
  %449 = vmatprep.subr.mxu0 0.0
  %v450 = vand.u32 %v43, 4294901760
  %v451 = vsub.f32 %v43, %v450
  %452 = vmatpush1.msra.mxu0 %v451
  %453 = vmatprep.subr.mxu0 0.0
  %v454 = vand.u32 %v44, 4294901760
  %v455 = vsub.f32 %v44, %v454
  %456 = vmatpush1.msra.mxu0 %v455
  %457 = vmatprep.subr.mxu0 0.0
  %v458 = vand.u32 %v45, 4294901760
  %v459 = vsub.f32 %v45, %v458
  %460 = vmatpush1.msra.mxu0 %v459
  %461 = vmatprep.subr.mxu0 0.0
  %v462 = vand.u32 %v46, 4294901760
  %v463 = vsub.f32 %v46, %v462
  %464 = vmatpush1.msra.mxu0 %v463
  %465 = vmatprep.subr.mxu0 0.0
  %v466 = vand.u32 %v47, 4294901760
  %v467 = vsub.f32 %v47, %v466
  %468 = vmatpush1.msra.mxu0 %v467
  %469 = vmatprep.subr.mxu0 0.0
  %v470 = vand.u32 %v48, 4294901760
  %v471 = vsub.f32 %v48, %v470
  %472 = vmatpush1.msra.mxu0 %v471
  %473 = vmatprep.subr.mxu0 0.0
  %v474 = vand.u32 %v49, 4294901760
  %v475 = vsub.f32 %v49, %v474
  %476 = vmatpush1.msra.mxu0 %v475
  %477 = vmatprep.subr.mxu0 0.0
  %v478 = vand.u32 %v50, 4294901760
  %v479 = vsub.f32 %v50, %v478
  %480 = vmatpush1.msra.mxu0 %v479
  %481 = vmatprep.subr.mxu0 0.0
  %v482 = vand.u32 %v51, 4294901760
  %v483 = vsub.f32 %v51, %v482
  %484 = vmatpush1.msra.mxu0 %v483
  %485 = vmatprep.subr.mxu0 0.0
  %v486 = vand.u32 %v52, 4294901760
  %v487 = vsub.f32 %v52, %v486
  %488 = vmatpush1.msra.mxu0 %v487
  %489 = vmatprep.subr.mxu0 0.0
  %v490 = vand.u32 %v53, 4294901760
  %v491 = vsub.f32 %v53, %v490
  %492 = vmatpush1.msra.mxu0 %v491
  %493 = vmatprep.subr.mxu0 0.0
  %v494 = vand.u32 %v54, 4294901760
  %v495 = vsub.f32 %v54, %v494
  %496 = vmatpush1.msra.mxu0 %v495
  %497 = vmatprep.subr.mxu0 0.0
  %v498 = vand.u32 %v55, 4294901760
  %v499 = vsub.f32 %v55, %v498
  %500 = vmatpush1.msra.mxu0 %v499
  %501 = vmatprep.subr.mxu0 0.0
  %v502 = vand.u32 %v56, 4294901760
  %v503 = vsub.f32 %v56, %v502
  %504 = vmatpush1.msra.mxu0 %v503
  %505 = vmatprep.subr.mxu0 0.0
  %v506 = vand.u32 %v57, 4294901760
  %v507 = vsub.f32 %v57, %v506
  %508 = vmatpush1.msra.mxu0 %v507
  %509 = vmatprep.subr.mxu0 0.0
  %v510 = vand.u32 %v58, 4294901760
  %v511 = vsub.f32 %v58, %v510
  %512 = vmatpush1.msra.mxu0 %v511
  %513 = vmatprep.subr.mxu0 0.0
  %v514 = vand.u32 %v59, 4294901760
  %v515 = vsub.f32 %v59, %v514
  %516 = vmatpush1.msra.mxu0 %v515
  %517 = vmatprep.subr.mxu0 0.0
  %v518 = vand.u32 %v60, 4294901760
  %v519 = vsub.f32 %v60, %v518
  %520 = vmatpush1.msra.mxu0 %v519
  %521 = vmatprep.subr.mxu0 0.0
  %v522 = vand.u32 %v61, 4294901760
  %v523 = vsub.f32 %v61, %v522
  %524 = vmatpush1.msra.mxu0 %v523
  %525 = vmatprep.subr.mxu0 0.0
  %v526 = vand.u32 %v62, 4294901760
  %v527 = vsub.f32 %v62, %v526
  %528 = vmatpush1.msra.mxu0 %v527
  %529 = vmatprep.subr.mxu0 0.0
  %v530 = vand.u32 %v63, 4294901760
  %v531 = vsub.f32 %v63, %v530
  %532 = vmatpush1.msra.mxu0 %v531
  %533 = vmatprep.subr.mxu0 0.0
  %v534 = vand.u32 %v64, 4294901760
  %v535 = vsub.f32 %v64, %v534
  %536 = vmatpush1.msra.mxu0 %v535
  %v537 = vand.u32 %v32, 4294901760
  %v538 = vsub.f32 %v32, %v537
  %539 = vmatprep.mubr.f32.mxu0 %v538
  %v540 = vand.u32 %v30, 4294901760
  %v541 = vsub.f32 %v30, %v540
  %542 = vmatmul.mubr.f32.gmra.mrb[0].mxu0 %v541
  %v543 = vpop.f32.mrb[0].mxu0
  %v544 = vadd.f32 %v406, %v543
  %v545 = vpop.f32.mrb[0].mxu0
  %546 = vdwg.mxu0
  %547 = vmatprep.subr.mxu0 0.0
  %v548 = vand.u32 %v33, 4294901760
  %549 = vmatpush1.msra.mxu0 %v548
  %550 = vmatprep.subr.mxu0 0.0
  %v551 = vand.u32 %v34, 4294901760
  %552 = vmatpush1.msra.mxu0 %v551
  %553 = vmatprep.subr.mxu0 0.0
  %v554 = vand.u32 %v35, 4294901760
  %555 = vmatpush1.msra.mxu0 %v554
  %556 = vmatprep.subr.mxu0 0.0
  %v557 = vand.u32 %v36, 4294901760
  %558 = vmatpush1.msra.mxu0 %v557
  %559 = vmatprep.subr.mxu0 0.0
  %v560 = vand.u32 %v37, 4294901760
  %561 = vmatpush1.msra.mxu0 %v560
  %562 = vmatprep.subr.mxu0 0.0
  %v563 = vand.u32 %v38, 4294901760
  %564 = vmatpush1.msra.mxu0 %v563
  %565 = vmatprep.subr.mxu0 0.0
  %v566 = vand.u32 %v39, 4294901760
  %567 = vmatpush1.msra.mxu0 %v566
  %568 = vmatprep.subr.mxu0 0.0
  %v569 = vand.u32 %v40, 4294901760
  %570 = vmatpush1.msra.mxu0 %v569
  %571 = vmatprep.subr.mxu0 0.0
  %v572 = vand.u32 %v41, 4294901760
  %573 = vmatpush1.msra.mxu0 %v572
  %574 = vmatprep.subr.mxu0 0.0
  %v575 = vand.u32 %v42, 4294901760
  %576 = vmatpush1.msra.mxu0 %v575
  %577 = vmatprep.subr.mxu0 0.0
  %v578 = vand.u32 %v43, 4294901760
  %579 = vmatpush1.msra.mxu0 %v578
  %580 = vmatprep.subr.mxu0 0.0
  %v581 = vand.u32 %v44, 4294901760
  %582 = vmatpush1.msra.mxu0 %v581
  %583 = vmatprep.subr.mxu0 0.0
  %v584 = vand.u32 %v45, 4294901760
  %585 = vmatpush1.msra.mxu0 %v584
  %586 = vmatprep.subr.mxu0 0.0
  %v587 = vand.u32 %v46, 4294901760
  %588 = vmatpush1.msra.mxu0 %v587
  %589 = vmatprep.subr.mxu0 0.0
  %v590 = vand.u32 %v47, 4294901760
  %591 = vmatpush1.msra.mxu0 %v590
  %592 = vmatprep.subr.mxu0 0.0
  %v593 = vand.u32 %v48, 4294901760
  %594 = vmatpush1.msra.mxu0 %v593
  %595 = vmatprep.subr.mxu0 0.0
  %v596 = vand.u32 %v49, 4294901760
  %597 = vmatpush1.msra.mxu0 %v596
  %598 = vmatprep.subr.mxu0 0.0
  %v599 = vand.u32 %v50, 4294901760
  %600 = vmatpush1.msra.mxu0 %v599
  %601 = vmatprep.subr.mxu0 0.0
  %v602 = vand.u32 %v51, 4294901760
  %603 = vmatpush1.msra.mxu0 %v602
  %604 = vmatprep.subr.mxu0 0.0
  %v605 = vand.u32 %v52, 4294901760
  %606 = vmatpush1.msra.mxu0 %v605
  %607 = vmatprep.subr.mxu0 0.0
  %v608 = vand.u32 %v53, 4294901760
  %609 = vmatpush1.msra.mxu0 %v608
  %610 = vmatprep.subr.mxu0 0.0
  %v611 = vand.u32 %v54, 4294901760
  %612 = vmatpush1.msra.mxu0 %v611
  %613 = vmatprep.subr.mxu0 0.0
  %v614 = vand.u32 %v55, 4294901760
  %615 = vmatpush1.msra.mxu0 %v614
  %616 = vmatprep.subr.mxu0 0.0
  %v617 = vand.u32 %v56, 4294901760
  %618 = vmatpush1.msra.mxu0 %v617
  %619 = vmatprep.subr.mxu0 0.0
  %v620 = vand.u32 %v57, 4294901760
  %621 = vmatpush1.msra.mxu0 %v620
  %622 = vmatprep.subr.mxu0 0.0
  %v623 = vand.u32 %v58, 4294901760
  %624 = vmatpush1.msra.mxu0 %v623
  %625 = vmatprep.subr.mxu0 0.0
  %v626 = vand.u32 %v59, 4294901760
  %627 = vmatpush1.msra.mxu0 %v626
  %628 = vmatprep.subr.mxu0 0.0
  %v629 = vand.u32 %v60, 4294901760
  %630 = vmatpush1.msra.mxu0 %v629
  %631 = vmatprep.subr.mxu0 0.0
  %v632 = vand.u32 %v61, 4294901760
  %633 = vmatpush1.msra.mxu0 %v632
  %634 = vmatprep.subr.mxu0 0.0
  %v635 = vand.u32 %v62, 4294901760
  %636 = vmatpush1.msra.mxu0 %v635
  %637 = vmatprep.subr.mxu0 0.0
  %v638 = vand.u32 %v63, 4294901760
  %639 = vmatpush1.msra.mxu0 %v638
  %640 = vmatprep.subr.mxu0 0.0
  %v641 = vand.u32 %v64, 4294901760
  %642 = vmatpush1.msra.mxu0 %v641
  %v643 = vand.u32 %v32, 4294901760
  %v644 = vsub.f32 %v32, %v643
  %v645 = vand.u32 %v644, 4294901760
  %646 = vmatprep.mubr.f32.mxu0 %v645
  %v647 = vand.u32 %v30, 4294901760
  %v648 = vsub.f32 %v30, %v647
  %v649 = vand.u32 %v648, 4294901760
  %650 = vmatmul.mubr.f32.gmra.mrb[0].mxu0 %v649
  %v651 = vpop.f32.mrb[0].mxu0
  %v652 = vadd.f32 %v544, %v651
  %v653 = vpop.f32.mrb[0].mxu0
  %654 = vdwg.mxu0
  %655 = vmatprep.subr.mxu0 0.0
  %v656 = vand.u32 %v33, 4294901760
  %v657 = vsub.f32 %v33, %v656
  %v658 = vand.u32 %v657, 4294901760
  %659 = vmatpush1.msra.mxu0 %v658
  %660 = vmatprep.subr.mxu0 0.0
  %v661 = vand.u32 %v34, 4294901760
  %v662 = vsub.f32 %v34, %v661
  %v663 = vand.u32 %v662, 4294901760
  %664 = vmatpush1.msra.mxu0 %v663
  %665 = vmatprep.subr.mxu0 0.0
  %v666 = vand.u32 %v35, 4294901760
  %v667 = vsub.f32 %v35, %v666
  %v668 = vand.u32 %v667, 4294901760
  %669 = vmatpush1.msra.mxu0 %v668
  %670 = vmatprep.subr.mxu0 0.0
  %v671 = vand.u32 %v36, 4294901760
  %v672 = vsub.f32 %v36, %v671
  %v673 = vand.u32 %v672, 4294901760
  %674 = vmatpush1.msra.mxu0 %v673
  %675 = vmatprep.subr.mxu0 0.0
  %v676 = vand.u32 %v37, 4294901760
  %v677 = vsub.f32 %v37, %v676
  %v678 = vand.u32 %v677, 4294901760
  %679 = vmatpush1.msra.mxu0 %v678
  %680 = vmatprep.subr.mxu0 0.0
  %v681 = vand.u32 %v38, 4294901760
  %v682 = vsub.f32 %v38, %v681
  %v683 = vand.u32 %v682, 4294901760
  %684 = vmatpush1.msra.mxu0 %v683
  %685 = vmatprep.subr.mxu0 0.0
  %v686 = vand.u32 %v39, 4294901760
  %v687 = vsub.f32 %v39, %v686
  %v688 = vand.u32 %v687, 4294901760
  %689 = vmatpush1.msra.mxu0 %v688
  %690 = vmatprep.subr.mxu0 0.0
  %v691 = vand.u32 %v40, 4294901760
  %v692 = vsub.f32 %v40, %v691
  %v693 = vand.u32 %v692, 4294901760
  %694 = vmatpush1.msra.mxu0 %v693
  %695 = vmatprep.subr.mxu0 0.0
  %v696 = vand.u32 %v41, 4294901760
  %v697 = vsub.f32 %v41, %v696
  %v698 = vand.u32 %v697, 4294901760
  %699 = vmatpush1.msra.mxu0 %v698
  %700 = vmatprep.subr.mxu0 0.0
  %v701 = vand.u32 %v42, 4294901760
  %v702 = vsub.f32 %v42, %v701
  %v703 = vand.u32 %v702, 4294901760
  %704 = vmatpush1.msra.mxu0 %v703
  %705 = vmatprep.subr.mxu0 0.0
  %v706 = vand.u32 %v43, 4294901760
  %v707 = vsub.f32 %v43, %v706
  %v708 = vand.u32 %v707, 4294901760
  %709 = vmatpush1.msra.mxu0 %v708
  %710 = vmatprep.subr.mxu0 0.0
  %v711 = vand.u32 %v44, 4294901760
  %v712 = vsub.f32 %v44, %v711
  %v713 = vand.u32 %v712, 4294901760
  %714 = vmatpush1.msra.mxu0 %v713
  %715 = vmatprep.subr.mxu0 0.0
  %v716 = vand.u32 %v45, 4294901760
  %v717 = vsub.f32 %v45, %v716
  %v718 = vand.u32 %v717, 4294901760
  %719 = vmatpush1.msra.mxu0 %v718
  %720 = vmatprep.subr.mxu0 0.0
  %v721 = vand.u32 %v46, 4294901760
  %v722 = vsub.f32 %v46, %v721
  %v723 = vand.u32 %v722, 4294901760
  %724 = vmatpush1.msra.mxu0 %v723
  %725 = vmatprep.subr.mxu0 0.0
  %v726 = vand.u32 %v47, 4294901760
  %v727 = vsub.f32 %v47, %v726
  %v728 = vand.u32 %v727, 4294901760
  %729 = vmatpush1.msra.mxu0 %v728
  %730 = vmatprep.subr.mxu0 0.0
  %v731 = vand.u32 %v48, 4294901760
  %v732 = vsub.f32 %v48, %v731
  %v733 = vand.u32 %v732, 4294901760
  %734 = vmatpush1.msra.mxu0 %v733
  %735 = vmatprep.subr.mxu0 0.0
  %v736 = vand.u32 %v49, 4294901760
  %v737 = vsub.f32 %v49, %v736
  %v738 = vand.u32 %v737, 4294901760
  %739 = vmatpush1.msra.mxu0 %v738
  %740 = vmatprep.subr.mxu0 0.0
  %v741 = vand.u32 %v50, 4294901760
  %v742 = vsub.f32 %v50, %v741
  %v743 = vand.u32 %v742, 4294901760
  %744 = vmatpush1.msra.mxu0 %v743
  %745 = vmatprep.subr.mxu0 0.0
  %v746 = vand.u32 %v51, 4294901760
  %v747 = vsub.f32 %v51, %v746
  %v748 = vand.u32 %v747, 4294901760
  %749 = vmatpush1.msra.mxu0 %v748
  %750 = vmatprep.subr.mxu0 0.0
  %v751 = vand.u32 %v52, 4294901760
  %v752 = vsub.f32 %v52, %v751
  %v753 = vand.u32 %v752, 4294901760
  %754 = vmatpush1.msra.mxu0 %v753
  %755 = vmatprep.subr.mxu0 0.0
  %v756 = vand.u32 %v53, 4294901760
  %v757 = vsub.f32 %v53, %v756
  %v758 = vand.u32 %v757, 4294901760
  %759 = vmatpush1.msra.mxu0 %v758
  %760 = vmatprep.subr.mxu0 0.0
  %v761 = vand.u32 %v54, 4294901760
  %v762 = vsub.f32 %v54, %v761
  %v763 = vand.u32 %v762, 4294901760
  %764 = vmatpush1.msra.mxu0 %v763
  %765 = vmatprep.subr.mxu0 0.0
  %v766 = vand.u32 %v55, 4294901760
  %v767 = vsub.f32 %v55, %v766
  %v768 = vand.u32 %v767, 4294901760
  %769 = vmatpush1.msra.mxu0 %v768
  %770 = vmatprep.subr.mxu0 0.0
  %v771 = vand.u32 %v56, 4294901760
  %v772 = vsub.f32 %v56, %v771
  %v773 = vand.u32 %v772, 4294901760
  %774 = vmatpush1.msra.mxu0 %v773
  %775 = vmatprep.subr.mxu0 0.0
  %v776 = vand.u32 %v57, 4294901760
  %v777 = vsub.f32 %v57, %v776
  %v778 = vand.u32 %v777, 4294901760
  %779 = vmatpush1.msra.mxu0 %v778
  %780 = vmatprep.subr.mxu0 0.0
  %v781 = vand.u32 %v58, 4294901760
  %v782 = vsub.f32 %v58, %v781
  %v783 = vand.u32 %v782, 4294901760
  %784 = vmatpush1.msra.mxu0 %v783
  %785 = vmatprep.subr.mxu0 0.0
  %v786 = vand.u32 %v59, 4294901760
  %v787 = vsub.f32 %v59, %v786
  %v788 = vand.u32 %v787, 4294901760
  %789 = vmatpush1.msra.mxu0 %v788
  %790 = vmatprep.subr.mxu0 0.0
  %v791 = vand.u32 %v60, 4294901760
  %v792 = vsub.f32 %v60, %v791
  %v793 = vand.u32 %v792, 4294901760
  %794 = vmatpush1.msra.mxu0 %v793
  %795 = vmatprep.subr.mxu0 0.0
  %v796 = vand.u32 %v61, 4294901760
  %v797 = vsub.f32 %v61, %v796
  %v798 = vand.u32 %v797, 4294901760
  %799 = vmatpush1.msra.mxu0 %v798
  %800 = vmatprep.subr.mxu0 0.0
  %v801 = vand.u32 %v62, 4294901760
  %v802 = vsub.f32 %v62, %v801
  %v803 = vand.u32 %v802, 4294901760
  %804 = vmatpush1.msra.mxu0 %v803
  %805 = vmatprep.subr.mxu0 0.0
  %v806 = vand.u32 %v63, 4294901760
  %v807 = vsub.f32 %v63, %v806
  %v808 = vand.u32 %v807, 4294901760
  %809 = vmatpush1.msra.mxu0 %v808
  %810 = vmatprep.subr.mxu0 0.0
  %v811 = vand.u32 %v64, 4294901760
  %v812 = vsub.f32 %v64, %v811
  %v813 = vand.u32 %v812, 4294901760
  %814 = vmatpush1.msra.mxu0 %v813
  %v815 = vand.u32 %v32, 4294901760
  %816 = vmatprep.mubr.f32.mxu0 %v815
  %v817 = vand.u32 %v30, 4294901760
  %818 = vmatmul.mubr.f32.gmra.mrb[0].mxu0 %v817
  %v819 = vpop.f32.mrb[0].mxu0
  %v820 = vadd.f32 %v652, %v819
  %v821 = vpop.f32.mrb[0].mxu0
  %822 = vdwg.mxu0
  %823 = vmatprep.subr.mxu0 0.0
  %v824 = vand.u32 %v33, 4294901760
  %825 = vmatpush1.msra.mxu0 %v824
  %826 = vmatprep.subr.mxu0 0.0
  %v827 = vand.u32 %v34, 4294901760
  %828 = vmatpush1.msra.mxu0 %v827
  %829 = vmatprep.subr.mxu0 0.0
  %v830 = vand.u32 %v35, 4294901760
  %831 = vmatpush1.msra.mxu0 %v830
  %832 = vmatprep.subr.mxu0 0.0
  %v833 = vand.u32 %v36, 4294901760
  %834 = vmatpush1.msra.mxu0 %v833
  %835 = vmatprep.subr.mxu0 0.0
  %v836 = vand.u32 %v37, 4294901760
  %837 = vmatpush1.msra.mxu0 %v836
  %838 = vmatprep.subr.mxu0 0.0
  %v839 = vand.u32 %v38, 4294901760
  %840 = vmatpush1.msra.mxu0 %v839
  %841 = vmatprep.subr.mxu0 0.0
  %v842 = vand.u32 %v39, 4294901760
  %843 = vmatpush1.msra.mxu0 %v842
  %844 = vmatprep.subr.mxu0 0.0
  %v845 = vand.u32 %v40, 4294901760
  %846 = vmatpush1.msra.mxu0 %v845
  %847 = vmatprep.subr.mxu0 0.0
  %v848 = vand.u32 %v41, 4294901760
  %849 = vmatpush1.msra.mxu0 %v848
  %850 = vmatprep.subr.mxu0 0.0
  %v851 = vand.u32 %v42, 4294901760
  %852 = vmatpush1.msra.mxu0 %v851
  %853 = vmatprep.subr.mxu0 0.0
  %v854 = vand.u32 %v43, 4294901760
  %855 = vmatpush1.msra.mxu0 %v854
  %856 = vmatprep.subr.mxu0 0.0
  %v857 = vand.u32 %v44, 4294901760
  %858 = vmatpush1.msra.mxu0 %v857
  %859 = vmatprep.subr.mxu0 0.0
  %v860 = vand.u32 %v45, 4294901760
  %861 = vmatpush1.msra.mxu0 %v860
  %862 = vmatprep.subr.mxu0 0.0
  %v863 = vand.u32 %v46, 4294901760
  %864 = vmatpush1.msra.mxu0 %v863
  %865 = vmatprep.subr.mxu0 0.0
  %v866 = vand.u32 %v47, 4294901760
  %867 = vmatpush1.msra.mxu0 %v866
  %868 = vmatprep.subr.mxu0 0.0
  %v869 = vand.u32 %v48, 4294901760
  %870 = vmatpush1.msra.mxu0 %v869
  %871 = vmatprep.subr.mxu0 0.0
  %v872 = vand.u32 %v49, 4294901760
  %873 = vmatpush1.msra.mxu0 %v872
  %874 = vmatprep.subr.mxu0 0.0
  %v875 = vand.u32 %v50, 4294901760
  %876 = vmatpush1.msra.mxu0 %v875
  %877 = vmatprep.subr.mxu0 0.0
  %v878 = vand.u32 %v51, 4294901760
  %879 = vmatpush1.msra.mxu0 %v878
  %880 = vmatprep.subr.mxu0 0.0
  %v881 = vand.u32 %v52, 4294901760
  %882 = vmatpush1.msra.mxu0 %v881
  %883 = vmatprep.subr.mxu0 0.0
  %v884 = vand.u32 %v53, 4294901760
  %885 = vmatpush1.msra.mxu0 %v884
  %886 = vmatprep.subr.mxu0 0.0
  %v887 = vand.u32 %v54, 4294901760
  %888 = vmatpush1.msra.mxu0 %v887
  %889 = vmatprep.subr.mxu0 0.0
  %v890 = vand.u32 %v55, 4294901760
  %891 = vmatpush1.msra.mxu0 %v890
  %892 = vmatprep.subr.mxu0 0.0
  %v893 = vand.u32 %v56, 4294901760
  %894 = vmatpush1.msra.mxu0 %v893
  %895 = vmatprep.subr.mxu0 0.0
  %v896 = vand.u32 %v57, 4294901760
  %897 = vmatpush1.msra.mxu0 %v896
  %898 = vmatprep.subr.mxu0 0.0
  %v899 = vand.u32 %v58, 4294901760
  %900 = vmatpush1.msra.mxu0 %v899
  %901 = vmatprep.subr.mxu0 0.0
  %v902 = vand.u32 %v59, 4294901760
  %903 = vmatpush1.msra.mxu0 %v902
  %904 = vmatprep.subr.mxu0 0.0
  %v905 = vand.u32 %v60, 4294901760
  %906 = vmatpush1.msra.mxu0 %v905
  %907 = vmatprep.subr.mxu0 0.0
  %v908 = vand.u32 %v61, 4294901760
  %909 = vmatpush1.msra.mxu0 %v908
  %910 = vmatprep.subr.mxu0 0.0
  %v911 = vand.u32 %v62, 4294901760
  %912 = vmatpush1.msra.mxu0 %v911
  %913 = vmatprep.subr.mxu0 0.0
  %v914 = vand.u32 %v63, 4294901760
  %915 = vmatpush1.msra.mxu0 %v914
  %916 = vmatprep.subr.mxu0 0.0
  %v917 = vand.u32 %v64, 4294901760
  %918 = vmatpush1.msra.mxu0 %v917
  %v919 = vand.u32 %v32, 4294901760
  %920 = vmatprep.mubr.f32.mxu0 %v919
  %v921 = vand.u32 %v30, 4294901760
  %922 = vmatmul.mubr.f32.gmra.mrb[0].mxu0 %v921
  %v923 = vpop.f32.mrb[0].mxu0
  %v924 = vadd.f32 %v820, %v923
  %v925 = vpop.f32.mrb[0].mxu0
  %926 = vdwg.mxu0
  %v927 = vrcp.pop %v924
  %929 = vset.pattern.permute.xlu0 0
  %930 = vperm.xlu0 %929, %v927
  %v931 = vpop.permute.xlu0 %930
  %v933 = vmul.f32 %v924, %v931
  %935 = vrot.lane.b32.xlu0 %v933, 127
  %v936 = vpop.permute.xlu0 %935
  %vm938 = vcmask 15360
  %939 = vst.msk [vmem:[%s3] sm:$0xff] %vm938, %v936
  // Predicated region
  $region14: #{spatial_softmax.1} parent=0 // pred_check
    _
  $region15: #{spatial_softmax.1} parent=0 // pred_check_branch
    %941 = sbr.rel (0) target = $region17
  $region16: #{spatial_softmax.1} parent=0 // pred_region
    _
  $region17: #{spatial_softmax.1} parent=0 // pred_fallthru
    _
  // Predicated region
  $region18: #{spatial_softmax.1} parent=0 // pred_check
    _
  $region19: #{spatial_softmax.1} parent=0 // pred_check_branch
    %943 = sbr.rel (0) target = $region21
  $region20: #{spatial_softmax.1} parent=0 // pred_region
    _
  $region21: #{spatial_softmax.1} parent=0 // pred_fallthru
    _

</llo_original>
